<compile_context>
chip_gen: v7x
topology: tpu7x:2x2x1
jax: 0.10.0
libtpu: 0.0.40
codegen_flags: <defaults>
</compile_context>

<pallas_src>
import jax
import jax.numpy as jnp
from jax.experimental import pallas as pl
from jax.experimental.pallas import tpu as pltpu

# --------------------------------------------------------------------------
# Sizes implied by the module
# --------------------------------------------------------------------------
BATCH = 2
FEAT = 400        # InceptionI3d output width (nn.Linear(400, 128))
FEAT_PAD = 512    # K padded to a multiple of 128 -> full MXU K-passes
HIDDEN = 128      # fc1 output width
OUT = 2           # fc2 output width
OUT_PAD = 128     # lane-dense output slab; real logits live in lanes [:2]


# --------------------------------------------------------------------------
# Fused head kernel: relu(fc2(relu(dropout(fc1(x)))))
# --------------------------------------------------------------------------
def _head_kernel(x_ref, w1_ref, b1_ref, w2_ref, b2_ref, o_ref):
    # x:  (B, 512) bf16    w1: (512, 128) bf16   b1: (1, 128) f32
    # w2: (128, 128) bf16  b2: (1, 128) f32      -> o: (B, 128) f32
    h = (
        jnp.dot(x_ref[...], w1_ref[...], preferred_element_type=jnp.float32)
        + b1_ref[...]
    )
    # TODO(synk): dropout1(p=0.25) is identity in eval/inference mode; no
    # training-mode (mask + 1/(1-p) scale) path is implemented.
    h = jnp.maximum(h, 0.0)                      # relu(dropout(fc1(x)))
    y = (
        jnp.dot(h.astype(jnp.bfloat16), w2_ref[...],
                preferred_element_type=jnp.float32)
        + b2_ref[...]
    )
    o_ref[...] = jnp.maximum(y, 0.0)             # relu(fc2(.))


# --------------------------------------------------------------------------
# Parameters (deterministic, PyTorch nn.Linear-style uniform init ranges).
# Kernel operands (padded + bf16) are precomputed HERE, once.
# --------------------------------------------------------------------------
def init_params(key):
    k1, k2, k3, k4 = jax.random.split(key, 4)

    def unif(k, shape, fan_in):
        bound = 1.0 / (fan_in ** 0.5)
        return jax.random.uniform(k, shape, jnp.float32, -bound, bound)

    fc1_w = unif(k1, (FEAT, HIDDEN), FEAT)       # stored transposed (in, out)
    fc1_b = unif(k2, (HIDDEN,), FEAT)
    fc2_w = unif(k3, (HIDDEN, OUT), HIDDEN)      # stored transposed (in, out)
    fc2_b = unif(k4, (OUT,), HIDDEN)

    # --- static, pre-padded kernel operands (built once, not per call) ---
    w1p = (
        jnp.zeros((FEAT_PAD, HIDDEN), jnp.float32)
        .at[:FEAT, :].set(fc1_w)
        .astype(jnp.bfloat16)
    )
    b1p = fc1_b.reshape(1, HIDDEN)                                    # f32
    w2p = (
        jnp.zeros((HIDDEN, OUT_PAD), jnp.float32)
        .at[:, :OUT].set(fc2_w)
        .astype(jnp.bfloat16)
    )
    b2p = jnp.zeros((1, OUT_PAD), jnp.float32).at[0, :OUT].set(fc2_b)  # f32

    return {
        # raw params (reference / checkpoint-equivalent)
        "fc1_w": fc1_w, "fc1_b": fc1_b, "fc2_w": fc2_w, "fc2_b": fc2_b,
        # kernel-ready padded/bf16 operands
        "w1p": w1p, "b1p": b1p, "w2p": w2p, "b2p": b2p,
    }


# --------------------------------------------------------------------------
# Jitted forward: pad feats, one pallas_call, slice logits — one dispatch.
# --------------------------------------------------------------------------
@jax.jit
def forward(feats, params):
    """feats: (B, 400) I3D features -> (B, 2) gaze prediction."""
    # TODO(synk): self.model (InceptionI3d, pretrained rgb_imagenet.pt
    # checkpoint) is not translatable in-script; `feats` stands for its
    # (B, 400) output.
    B = feats.shape[0]

    # Zero-pad the contraction dim 400 -> 512 and cast to bf16 (MXU-native).
    x = (
        jnp.zeros((B, FEAT_PAD), jnp.bfloat16)
        .at[:, :FEAT].set(feats.astype(jnp.bfloat16))
    )

    bytes_accessed = (
        B * FEAT_PAD * 2            # x (bf16)
        + FEAT_PAD * HIDDEN * 2     # w1p (bf16)
        + HIDDEN * 4                # b1p (f32)
        + HIDDEN * OUT_PAD * 2      # w2p (bf16)
        + OUT_PAD * 4               # b2p (f32)
        + B * OUT_PAD * 4           # output (f32)
    )
    cost = pl.CostEstimate(
        flops=2 * B * (FEAT_PAD * HIDDEN + HIDDEN * OUT_PAD),
        transcendentals=0,
        bytes_accessed=bytes_accessed,
    )

    vmem_spec = pl.BlockSpec(memory_space=pltpu.MemorySpace.VMEM)
    out_padded = pl.pallas_call(
        _head_kernel,
        out_shape=jax.ShapeDtypeStruct((B, OUT_PAD), jnp.float32),
        in_specs=[vmem_spec] * 5,
        out_specs=vmem_spec,
        cost_estimate=cost,
    )(x, params["w1p"], params["b1p"], params["w2p"], params["b2p"])

    return out_padded[:, :OUT]


# --------------------------------------------------------------------------
if __name__ == "__main__":
    key = jax.random.PRNGKey(0)
    k_params, k_feats = jax.random.split(key)

    params = init_params(k_params)
    feats = jax.random.normal(k_feats, (BATCH, FEAT), jnp.float32)

    out = forward(feats, params)
    out = jax.block_until_ready(out)

    # Pure-JAX reference mirroring the kernel's bf16 quantization (dropout is
    # identity in eval mode).  Zero-padded fc2 columns give relu(0)=0 and are
    # sliced off, so semantics match the PyTorch head.
    feats_q = feats.astype(jnp.bfloat16).astype(jnp.float32)
    w1_q = params["w1p"].astype(jnp.float32)[:FEAT, :]
    w2_q = params["w2p"].astype(jnp.float32)[:, :OUT]
    h_ref = jnp.maximum(feats_q @ w1_q + params["fc1_b"], 0.0)
    h_ref = h_ref.astype(jnp.bfloat16).astype(jnp.float32)
    ref = jnp.maximum(h_ref @ w2_q + params["fc2_b"], 0.0)

    assert out.shape == (BATCH, OUT), out.shape
    assert out.dtype == jnp.float32
    assert bool(jnp.all(out >= 0.0))                       # ReLU output
    assert bool(jnp.allclose(out, ref, atol=1e-3, rtol=1e-3)), (out, ref)
    print("KERNEL_OK")
</pallas_src>

<mosaic_0001>
module attributes {stable_mosaic.version = 11 : i64} {
  func.func @_head_kernel(%arg0: memref<2x512xbf16, #tpu.memory_space<vmem>>, %arg1: memref<512x128xbf16, #tpu.memory_space<vmem>>, %arg2: memref<1x128xf32, #tpu.memory_space<vmem>>, %arg3: memref<128x128xbf16, #tpu.memory_space<vmem>>, %arg4: memref<1x128xf32, #tpu.memory_space<vmem>>, %arg5: memref<2x128xf32, #tpu.memory_space<vmem>>) attributes {dimension_semantics = [], scalar_prefetch = 0 : i64, scratch_operands = 0 : i64, tpu.core_type = #tpu.core_type<tc>} {
    %c0 = arith.constant 0 : index
    %c0_0 = arith.constant 0 : index
    %0 = vector.load %arg0[%c0, %c0_0] : memref<2x512xbf16, #tpu.memory_space<vmem>>, vector<2x512xbf16>
    %c0_1 = arith.constant 0 : index
    %c0_2 = arith.constant 0 : index
    %1 = vector.load %arg1[%c0_1, %c0_2] : memref<512x128xbf16, #tpu.memory_space<vmem>>, vector<512x128xbf16>
    %cst = arith.constant dense<0.000000e+00> : vector<2x128xf32>
    %2 = tpu.matmul %0, %1, %cst {dimension_numbers = #tpu.dot_dimension_numbers<[1], [0], [0], [1], [0, 0, 1, 1], [], []>} : vector<2x512xbf16>, vector<512x128xbf16>, vector<2x128xf32> -> vector<2x128xf32>
    %c0_3 = arith.constant 0 : index
    %c0_4 = arith.constant 0 : index
    %3 = vector.load %arg2[%c0_3, %c0_4] : memref<1x128xf32, #tpu.memory_space<vmem>>, vector<1x128xf32>
    %4 = vector.broadcast %3 : vector<1x128xf32> to vector<2x128xf32>
    %5 = arith.addf %2, %4 : vector<2x128xf32>
    %cst_5 = arith.constant 0.000000e+00 : f32
    %6 = vector.broadcast %cst_5 : f32 to vector<2x128xf32>
    %7 = arith.maximumf %5, %6 : vector<2x128xf32>
    %8 = arith.truncf %7 : vector<2x128xf32> to vector<2x128xbf16>
    %c0_6 = arith.constant 0 : index
    %c0_7 = arith.constant 0 : index
    %9 = vector.load %arg3[%c0_6, %c0_7] : memref<128x128xbf16, #tpu.memory_space<vmem>>, vector<128x128xbf16>
    %cst_8 = arith.constant dense<0.000000e+00> : vector<2x128xf32>
    %10 = tpu.matmul %8, %9, %cst_8 {dimension_numbers = #tpu.dot_dimension_numbers<[1], [0], [0], [1], [0, 0, 1, 1], [], []>} : vector<2x128xbf16>, vector<128x128xbf16>, vector<2x128xf32> -> vector<2x128xf32>
    %c0_9 = arith.constant 0 : index
    %c0_10 = arith.constant 0 : index
    %11 = vector.load %arg4[%c0_9, %c0_10] : memref<1x128xf32, #tpu.memory_space<vmem>>, vector<1x128xf32>
    %12 = vector.broadcast %11 : vector<1x128xf32> to vector<2x128xf32>
    %13 = arith.addf %10, %12 : vector<2x128xf32>
    %cst_11 = arith.constant 0.000000e+00 : f32
    %14 = vector.broadcast %cst_11 : f32 to vector<2x128xf32>
    %15 = arith.maximumf %13, %14 : vector<2x128xf32>
    %c0_12 = arith.constant 0 : index
    %c0_13 = arith.constant 0 : index
    %16 = vector.load %arg5[%c0_12, %c0_13] : memref<2x128xf32, #tpu.memory_space<vmem>>, vector<2x128xf32>
    tpu.vector_store %arg5[%c0_12, %c0_13], %15 {strides = array<i32>} : memref<2x128xf32, #tpu.memory_space<vmem>>, vector<2x128xf32>,
    return
  }
}

</mosaic_0001>

<llo_original>
// kernel: forward.1
$region0: #{forward.1}
  #allocation0 [shape = 'u32[]', space=smem, size = 0x4, offset = 0x4, fixed_abs, tag = 'smem constant byte address 0x4 - core index']
  #allocation1 [shape = 'u32[144,128]{1,0:T(1,128)}', space=vmem, size = 0x12000, scoped, tag = 'internal scratch']
  %s0 = inlined_call_operand.vmem [shape: bf16[2,512], index: 0, kind: input, shape index: {}]
  %s1 = inlined_call_operand.hbm [shape: bf16[512,128], index: 1, kind: input, shape index: {}]
  %s2 = inlined_call_operand.vmem [shape: f32[1,128], index: 2, kind: input, shape index: {}]
  %s3 = inlined_call_operand.hbm [shape: bf16[128,128], index: 3, kind: input, shape index: {}]
  %s4 = inlined_call_operand.vmem [shape: f32[1,128], index: 4, kind: input, shape index: {}]
  %s5 = inlined_call_operand.hbm [shape: f32[2,128], index: 5, kind: output, shape index: {}]
  %s6 = sld [smem:[#allocation0]]
  $region38: #{forward.1} parent=0
    _
  %s8 = ssub.s32 1, %s6
  %s9 = scalar_select 0, %s8, %s6
  $region1: #{forward.1} parent=0
    #allocation2 [shape = 'u8[131072]{0}', space=vmem, size = 0x20000, scoped, tag = 'input window, operand 1, single buffered']
    #allocation3 [shape = 's32[1]{0}', space=sflag, size = 0x4, scoped, tag = 'scoped memory for forward.1']
    #allocation4 [shape = 's32[1]{0}', space=sflag, size = 0x4, scoped, tag = 'scoped memory for forward.1']
    #allocation5 [shape = 'u8[32768]{0}', space=vmem, size = 0x8000, scoped, tag = 'input window, operand 3, single buffered']
    #allocation6 [shape = 's32[1]{0}', space=sflag, size = 0x4, scoped, tag = 'scoped memory for forward.1']
    #allocation7 [shape = 'u8[1024]{0}', space=vmem, size = 0x400, scoped, tag = 'output window, operand 0, single buffered']
    %10 = vsyncpa [#allocation3], 0
    %11 = vsyncpa [#allocation6], 0
    %12 = vsyncpa [#allocation4], 0
    // Predicated region
    $region2: #{forward.1} parent=1 // pred_check
      _
    $region3: #{forward.1} parent=1 // pred_check_branch
      %14 = sbr.rel (0) target = $region5
    $region4: #{forward.1} parent=1 // pred_region
      _
    $region5: #{forward.1} parent=1 // pred_fallthru
      _
    // Predicated region
    $region6: #{forward.1} parent=1 // pred_check
      _
    $region7: #{forward.1} parent=1 // pred_check_branch
      %16 = sbr.rel (0) target = $region9
    $region8: #{forward.1} parent=1 // pred_region
      %s18 = ssub.s32 4096, 4096
      %19 = vsyncadd [#allocation3], %s18
      %s20 = sshll.u32 [#allocation2], 4
      %s21 = int_to_ptr.vmem [resolvable:$true] %s20
      %26 = dma.hbm_to_vmem [thread:$0]  %s1, 4096, %s21, [#allocation3], 64, 64, 4
    $region9: #{forward.1} parent=1 // pred_fallthru
      _
    // Predicated region
    $region10: #{forward.1} parent=1 // pred_check
      _
    $region11: #{forward.1} parent=1 // pred_check_branch
      %28 = sbr.rel (0) target = $region13
    $region12: #{forward.1} parent=1 // pred_region
      _
    $region13: #{forward.1} parent=1 // pred_fallthru
      _
    // Predicated region
    $region14: #{forward.1} parent=1 // pred_check
      _
    $region15: #{forward.1} parent=1 // pred_check_branch
      %30 = sbr.rel (0) target = $region17
    $region16: #{forward.1} parent=1 // pred_region
      %s32 = ssub.s32 1024, 1024
      %33 = vsyncadd [#allocation6], %s32
      %s34 = sshll.u32 [#allocation5], 4
      %s35 = int_to_ptr.vmem [resolvable:$true] %s34
      %40 = dma.hbm_to_vmem [thread:$0]  %s3, 1024, %s35, [#allocation6], 64, 64, 4
    $region17: #{forward.1} parent=1 // pred_fallthru
      _
    // Predicated region
    $region18: #{forward.1} parent=1 // pred_check
      _
    $region19: #{forward.1} parent=1 // pred_check_branch
      %42 = sbr.rel (0) target = $region21
    $region20: #{forward.1} parent=1 // pred_region
      _
    $region21: #{forward.1} parent=1 // pred_fallthru
      _
    // Predicated region
    $region22: #{forward.1} parent=1 // pred_check
      _
    $region23: #{forward.1} parent=1 // pred_check_branch
      %44 = sbr.rel (0) target = $region25
    $region24: #{forward.1} parent=1 // pred_region
      %45 = dma.done [#allocation3], 4096
    $region25: #{forward.1} parent=1 // pred_fallthru
      _
    // Predicated region
    $region26: #{forward.1} parent=1 // pred_check
      _
    $region27: #{forward.1} parent=1 // pred_check_branch
      %47 = sbr.rel (0) target = $region29
    $region28: #{forward.1} parent=1 // pred_region
      %48 = dma.done [#allocation6], 1024
    $region29: #{forward.1} parent=1 // pred_fallthru
      _
    %v50 = vld [vmem:[%s0] sm:$0xf]
    %v51 = vld [vmem:[#allocation2] sm:$0xf]
    %v52 = vld [vmem:[#allocation2 + $0x4] sm:$0xf]
    %v53 = vld [vmem:[#allocation2 + $0x8] sm:$0xf]
    %v54 = vld [vmem:[#allocation2 + $0xc] sm:$0xf]
    %v55 = vld [vmem:[#allocation2 + $0x10] sm:$0xf]
    %v56 = vld [vmem:[#allocation2 + $0x14] sm:$0xf]
    %v57 = vld [vmem:[#allocation2 + $0x18] sm:$0xf]
    %v58 = vld [vmem:[#allocation2 + $0x1c] sm:$0xf]
    %v59 = vld [vmem:[#allocation2 + $0x20] sm:$0xf]
    %v60 = vld [vmem:[#allocation2 + $0x24] sm:$0xf]
    %v61 = vld [vmem:[#allocation2 + $0x28] sm:$0xf]
    %v62 = vld [vmem:[#allocation2 + $0x2c] sm:$0xf]
    %v63 = vld [vmem:[#allocation2 + $0x30] sm:$0xf]
    %v64 = vld [vmem:[#allocation2 + $0x34] sm:$0xf]
    %v65 = vld [vmem:[#allocation2 + $0x38] sm:$0xf]
    %v66 = vld [vmem:[#allocation2 + $0x3c] sm:$0xf]
    %v67 = vld [vmem:[#allocation2 + $0x40] sm:$0xf]
    %v68 = vld [vmem:[#allocation2 + $0x44] sm:$0xf]
    %v69 = vld [vmem:[#allocation2 + $0x48] sm:$0xf]
    %v70 = vld [vmem:[#allocation2 + $0x4c] sm:$0xf]
    %v71 = vld [vmem:[#allocation2 + $0x50] sm:$0xf]
    %v72 = vld [vmem:[#allocation2 + $0x54] sm:$0xf]
    %v73 = vld [vmem:[#allocation2 + $0x58] sm:$0xf]
    %v74 = vld [vmem:[#allocation2 + $0x5c] sm:$0xf]
    %v75 = vld [vmem:[#allocation2 + $0x60] sm:$0xf]
    %v76 = vld [vmem:[#allocation2 + $0x64] sm:$0xf]
    %v77 = vld [vmem:[#allocation2 + $0x68] sm:$0xf]
    %v78 = vld [vmem:[#allocation2 + $0x6c] sm:$0xf]
    %v79 = vld [vmem:[#allocation2 + $0x70] sm:$0xf]
    %v80 = vld [vmem:[#allocation2 + $0x74] sm:$0xf]
    %v81 = vld [vmem:[#allocation2 + $0x78] sm:$0xf]
    %v82 = vld [vmem:[#allocation2 + $0x7c] sm:$0xf]
    %v83 = vld [vmem:[#allocation2 + $0x80] sm:$0xf]
    %v84 = vld [vmem:[#allocation2 + $0x84] sm:$0xf]
    %v85 = vld [vmem:[#allocation2 + $0x88] sm:$0xf]
    %v86 = vld [vmem:[#allocation2 + $0x8c] sm:$0xf]
    %v87 = vld [vmem:[#allocation2 + $0x90] sm:$0xf]
    %v88 = vld [vmem:[#allocation2 + $0x94] sm:$0xf]
    %v89 = vld [vmem:[#allocation2 + $0x98] sm:$0xf]
    %v90 = vld [vmem:[#allocation2 + $0x9c] sm:$0xf]
    %v91 = vld [vmem:[#allocation2 + $0xa0] sm:$0xf]
    %v92 = vld [vmem:[#allocation2 + $0xa4] sm:$0xf]
    %v93 = vld [vmem:[#allocation2 + $0xa8] sm:$0xf]
    %v94 = vld [vmem:[#allocation2 + $0xac] sm:$0xf]
    %v95 = vld [vmem:[#allocation2 + $0xb0] sm:$0xf]
    %v96 = vld [vmem:[#allocation2 + $0xb4] sm:$0xf]
    %v97 = vld [vmem:[#allocation2 + $0xb8] sm:$0xf]
    %v98 = vld [vmem:[#allocation2 + $0xbc] sm:$0xf]
    %v99 = vld [vmem:[#allocation2 + $0xc0] sm:$0xf]
    %v100 = vld [vmem:[#allocation2 + $0xc4] sm:$0xf]
    %v101 = vld [vmem:[#allocation2 + $0xc8] sm:$0xf]
    %v102 = vld [vmem:[#allocation2 + $0xcc] sm:$0xf]
    %v103 = vld [vmem:[#allocation2 + $0xd0] sm:$0xf]
    %v104 = vld [vmem:[#allocation2 + $0xd4] sm:$0xf]
    %v105 = vld [vmem:[#allocation2 + $0xd8] sm:$0xf]
    %v106 = vld [vmem:[#allocation2 + $0xdc] sm:$0xf]
    %v107 = vld [vmem:[#allocation2 + $0xe0] sm:$0xf]
    %v108 = vld [vmem:[#allocation2 + $0xe4] sm:$0xf]
    %v109 = vld [vmem:[#allocation2 + $0xe8] sm:$0xf]
    %v110 = vld [vmem:[#allocation2 + $0xec] sm:$0xf]
    %v111 = vld [vmem:[#allocation2 + $0xf0] sm:$0xf]
    %v112 = vld [vmem:[#allocation2 + $0xf4] sm:$0xf]
    %v113 = vld [vmem:[#allocation2 + $0xf8] sm:$0xf]
    %v114 = vld [vmem:[#allocation2 + $0xfc] sm:$0xf]
    %v115 = vld [vmem:[%s2] sm:$0x1]
    %v117 = vlaneseq
    %v118 = vshrl.u32 %v117, 7
    %v119 = vsub.s32 0, %v118
    %v120 = vrot.slane %v115, %v119
    %v124 = vunpack.c.l.s4 1966171168
    %v125 = vunpack.c.0.s8 %v124
    %v126 = vlaneseq
    %v127 = vshrl.u32 %v126, 7
    %v128 = vsub.s32 %v125, %v127
    %v129 = vrot.slane %v50, %v128
    %v130 = vcombine.high %v129, %v129
    %v132 = vunpack.c.l.s4 1966171168
    %v133 = vunpack.c.0.s8 %v132
    %v134 = vlaneseq
    %v135 = vshrl.u32 %v134, 7
    %v136 = vsub.s32 %v133, %v135
    %v137 = vrot.slane %v129, %v136
    %v139 = vunpack.c.l.s4 1966171168
    %v140 = vunpack.c.0.s8 %v139
    %v141 = vlaneseq
    %v142 = vshrl.u32 %v141, 7
    %v143 = vsub.s32 %v140, %v142
    %v144 = vrot.slane %v130, %v143
    %v145 = vcombine.high %v137, %v137
    %v146 = vcombine.high %v144, %v144
    %v215 = vunpack.c.l.b16 %v51
    %v216 = vunpack.c.l.b16 %v52
    %v217 = vunpack.c.l.b16 %v53
    %v218 = vunpack.c.l.b16 %v54
    %v219 = vunpack.c.l.b16 %v55
    %v220 = vunpack.c.l.b16 %v56
    %v221 = vunpack.c.l.b16 %v57
    %v222 = vunpack.c.l.b16 %v58
    %v223 = vunpack.c.l.b16 %v59
    %v224 = vunpack.c.l.b16 %v60
    %v225 = vunpack.c.l.b16 %v61
    %v226 = vunpack.c.l.b16 %v62
    %v227 = vunpack.c.l.b16 %v63
    %v228 = vunpack.c.l.b16 %v64
    %v229 = vunpack.c.l.b16 %v65
    %v230 = vunpack.c.l.b16 %v66
    %v231 = vunpack.c.l.b16 %v67
    %v232 = vunpack.c.l.b16 %v68
    %v233 = vunpack.c.l.b16 %v69
    %v234 = vunpack.c.l.b16 %v70
    %v235 = vunpack.c.l.b16 %v71
    %v236 = vunpack.c.l.b16 %v72
    %v237 = vunpack.c.l.b16 %v73
    %v238 = vunpack.c.l.b16 %v74
    %v239 = vunpack.c.l.b16 %v75
    %v240 = vunpack.c.l.b16 %v76
    %v241 = vunpack.c.l.b16 %v77
    %v242 = vunpack.c.l.b16 %v78
    %v243 = vunpack.c.l.b16 %v79
    %v244 = vunpack.c.l.b16 %v80
    %v245 = vunpack.c.l.b16 %v81
    %v246 = vunpack.c.l.b16 %v82
    %v247 = vunpack.c.l.b16 %v83
    %v248 = vunpack.c.l.b16 %v84
    %v249 = vunpack.c.l.b16 %v85
    %v250 = vunpack.c.l.b16 %v86
    %v251 = vunpack.c.l.b16 %v87
    %v252 = vunpack.c.l.b16 %v88
    %v253 = vunpack.c.l.b16 %v89
    %v254 = vunpack.c.l.b16 %v90
    %v255 = vunpack.c.l.b16 %v91
    %v256 = vunpack.c.l.b16 %v92
    %v257 = vunpack.c.l.b16 %v93
    %v258 = vunpack.c.l.b16 %v94
    %v259 = vunpack.c.l.b16 %v95
    %v260 = vunpack.c.l.b16 %v96
    %v261 = vunpack.c.l.b16 %v97
    %v262 = vunpack.c.l.b16 %v98
    %v263 = vunpack.c.l.b16 %v99
    %v264 = vunpack.c.l.b16 %v100
    %v265 = vunpack.c.l.b16 %v101
    %v266 = vunpack.c.l.b16 %v102
    %v267 = vunpack.c.l.b16 %v103
    %v268 = vunpack.c.l.b16 %v104
    %v269 = vunpack.c.l.b16 %v105
    %v270 = vunpack.c.l.b16 %v106
    %v271 = vunpack.c.l.b16 %v107
    %v272 = vunpack.c.l.b16 %v108
    %v273 = vunpack.c.l.b16 %v109
    %v274 = vunpack.c.l.b16 %v110
    %v275 = vunpack.c.l.b16 %v111
    %v276 = vunpack.c.l.b16 %v112
    %v277 = vunpack.c.l.b16 %v113
    %v278 = vunpack.c.l.b16 %v114
    %v279 = vpack.c.b16 %v216, %v215
    %v280 = vpack.c.b16 %v218, %v217
    %v281 = vpack.c.b16 %v220, %v219
    %v282 = vpack.c.b16 %v222, %v221
    %v283 = vpack.c.b16 %v224, %v223
    %v284 = vpack.c.b16 %v226, %v225
    %v285 = vpack.c.b16 %v228, %v227
    %v286 = vpack.c.b16 %v230, %v229
    %v287 = vpack.c.b16 %v232, %v231
    %v288 = vpack.c.b16 %v234, %v233
    %v289 = vpack.c.b16 %v236, %v235
    %v290 = vpack.c.b16 %v238, %v237
    %v291 = vpack.c.b16 %v240, %v239
    %v292 = vpack.c.b16 %v242, %v241
    %v293 = vpack.c.b16 %v244, %v243
    %v294 = vpack.c.b16 %v246, %v245
    %v295 = vpack.c.b16 %v248, %v247
    %v296 = vpack.c.b16 %v250, %v249
    %v297 = vpack.c.b16 %v252, %v251
    %v298 = vpack.c.b16 %v254, %v253
    %v299 = vpack.c.b16 %v256, %v255
    %v300 = vpack.c.b16 %v258, %v257
    %v301 = vpack.c.b16 %v260, %v259
    %v302 = vpack.c.b16 %v262, %v261
    %v303 = vpack.c.b16 %v264, %v263
    %v304 = vpack.c.b16 %v266, %v265
    %v305 = vpack.c.b16 %v268, %v267
    %v306 = vpack.c.b16 %v270, %v269
    %v307 = vpack.c.b16 %v272, %v271
    %v308 = vpack.c.b16 %v274, %v273
    %v309 = vpack.c.b16 %v276, %v275
    %v310 = vpack.c.b16 %v278, %v277
    %343 = vmatprep.subr.bf16.mxu0 0
    %344 = vmatpush1.bf16.msra.mxu0 %v279
    %345 = vmatprep.subr.bf16.mxu0 0
    %346 = vmatpush1.bf16.msra.mxu0 %v280
    %347 = vmatprep.subr.bf16.mxu0 0
    %348 = vmatpush1.bf16.msra.mxu0 %v281
    %349 = vmatprep.subr.bf16.mxu0 0
    %350 = vmatpush1.bf16.msra.mxu0 %v282
    %351 = vmatprep.subr.bf16.mxu0 0
    %352 = vmatpush1.bf16.msra.mxu0 %v283
    %353 = vmatprep.subr.bf16.mxu0 0
    %354 = vmatpush1.bf16.msra.mxu0 %v284
    %355 = vmatprep.subr.bf16.mxu0 0
    %356 = vmatpush1.bf16.msra.mxu0 %v285
    %357 = vmatprep.subr.bf16.mxu0 0
    %358 = vmatpush1.bf16.msra.mxu0 %v286
    %359 = vmatprep.subr.bf16.mxu0 0
    %360 = vmatpush1.bf16.msra.mxu0 %v287
    %361 = vmatprep.subr.bf16.mxu0 0
    %362 = vmatpush1.bf16.msra.mxu0 %v288
    %363 = vmatprep.subr.bf16.mxu0 0
    %364 = vmatpush1.bf16.msra.mxu0 %v289
    %365 = vmatprep.subr.bf16.mxu0 0
    %366 = vmatpush1.bf16.msra.mxu0 %v290
    %367 = vmatprep.subr.bf16.mxu0 0
    %368 = vmatpush1.bf16.msra.mxu0 %v291
    %369 = vmatprep.subr.bf16.mxu0 0
    %370 = vmatpush1.bf16.msra.mxu0 %v292
    %371 = vmatprep.subr.bf16.mxu0 0
    %372 = vmatpush1.bf16.msra.mxu0 %v293
    %373 = vmatprep.subr.bf16.mxu0 0
    %374 = vmatpush1.bf16.msra.mxu0 %v294
    %375 = vmatprep.mubr.bf16.mxu0 %v144
    %376 = vmatmul.mubr.bf16.gmra.mrb[0].mxu0 %v137
    %v377 = vpop.f32.mrb[0].mxu0
    %v378 = vadd.f32 %v120, %v377
    %v379 = vpop.f32.mrb[0].mxu0
    %v380 = vpop.f32.mrb[0].mxu0
    %v381 = vpop.f32.mrb[0].mxu0
    %382 = vdwg.mxu0
    %383 = vmatprep.subr.bf16.mxu0 0
    %384 = vmatpush1.bf16.msra.mxu0 %v295
    %385 = vmatprep.subr.bf16.mxu0 0
    %386 = vmatpush1.bf16.msra.mxu0 %v296
    %387 = vmatprep.subr.bf16.mxu0 0
    %388 = vmatpush1.bf16.msra.mxu0 %v297
    %389 = vmatprep.subr.bf16.mxu0 0
    %390 = vmatpush1.bf16.msra.mxu0 %v298
    %391 = vmatprep.subr.bf16.mxu0 0
    %392 = vmatpush1.bf16.msra.mxu0 %v299
    %393 = vmatprep.subr.bf16.mxu0 0
    %394 = vmatpush1.bf16.msra.mxu0 %v300
    %395 = vmatprep.subr.bf16.mxu0 0
    %396 = vmatpush1.bf16.msra.mxu0 %v301
    %397 = vmatprep.subr.bf16.mxu0 0
    %398 = vmatpush1.bf16.msra.mxu0 %v302
    %399 = vmatprep.subr.bf16.mxu0 0
    %400 = vmatpush1.bf16.msra.mxu0 %v303
    %401 = vmatprep.subr.bf16.mxu0 0
    %402 = vmatpush1.bf16.msra.mxu0 %v304
    %403 = vmatprep.subr.bf16.mxu0 0
    %404 = vmatpush1.bf16.msra.mxu0 %v305
    %405 = vmatprep.subr.bf16.mxu0 0
    %406 = vmatpush1.bf16.msra.mxu0 %v306
    %407 = vmatprep.subr.bf16.mxu0 0
    %408 = vmatpush1.bf16.msra.mxu0 %v307
    %409 = vmatprep.subr.bf16.mxu0 0
    %410 = vmatpush1.bf16.msra.mxu0 %v308
    %411 = vmatprep.subr.bf16.mxu0 0
    %412 = vmatpush1.bf16.msra.mxu0 %v309
    %413 = vmatprep.subr.bf16.mxu0 0
    %414 = vmatpush1.bf16.msra.mxu0 %v310
    %415 = vmatprep.mubr.bf16.mxu0 %v146
    %416 = vmatmul.mubr.bf16.gmra.mrb[0].mxu0 %v145
    %v417 = vpop.f32.mrb[0].mxu0
    %v418 = vadd.f32 %v378, %v417
    %v419 = vpop.f32.mrb[0].mxu0
    %v420 = vpop.f32.mrb[0].mxu0
    %v421 = vpop.f32.mrb[0].mxu0
    %422 = vdwg.mxu0
    %v423 = vmax.f32 %v418, 0.0
    %v424 = vpack.c.bf16 %v423, %v423
    %v425 = vld [vmem:[#allocation5] sm:$0xf]
    %v426 = vld [vmem:[#allocation5 + $0x4] sm:$0xf]
    %v427 = vld [vmem:[#allocation5 + $0x8] sm:$0xf]
    %v428 = vld [vmem:[#allocation5 + $0xc] sm:$0xf]
    %v429 = vld [vmem:[#allocation5 + $0x10] sm:$0xf]
    %v430 = vld [vmem:[#allocation5 + $0x14] sm:$0xf]
    %v431 = vld [vmem:[#allocation5 + $0x18] sm:$0xf]
    %v432 = vld [vmem:[#allocation5 + $0x1c] sm:$0xf]
    %v433 = vld [vmem:[#allocation5 + $0x20] sm:$0xf]
    %v434 = vld [vmem:[#allocation5 + $0x24] sm:$0xf]
    %v435 = vld [vmem:[#allocation5 + $0x28] sm:$0xf]
    %v436 = vld [vmem:[#allocation5 + $0x2c] sm:$0xf]
    %v437 = vld [vmem:[#allocation5 + $0x30] sm:$0xf]
    %v438 = vld [vmem:[#allocation5 + $0x34] sm:$0xf]
    %v439 = vld [vmem:[#allocation5 + $0x38] sm:$0xf]
    %v440 = vld [vmem:[#allocation5 + $0x3c] sm:$0xf]
    %v441 = vld [vmem:[%s4] sm:$0x1]
    %v443 = vlaneseq
    %v444 = vshrl.u32 %v443, 7
    %v445 = vsub.s32 0, %v444
    %v446 = vrot.slane %v441, %v445
    %v464 = vunpack.c.l.b16 %v425
    %v465 = vunpack.c.l.b16 %v426
    %v466 = vunpack.c.l.b16 %v427
    %v467 = vunpack.c.l.b16 %v428
    %v468 = vunpack.c.l.b16 %v429
    %v469 = vunpack.c.l.b16 %v430
    %v470 = vunpack.c.l.b16 %v431
    %v471 = vunpack.c.l.b16 %v432
    %v472 = vunpack.c.l.b16 %v433
    %v473 = vunpack.c.l.b16 %v434
    %v474 = vunpack.c.l.b16 %v435
    %v475 = vunpack.c.l.b16 %v436
    %v476 = vunpack.c.l.b16 %v437
    %v477 = vunpack.c.l.b16 %v438
    %v478 = vunpack.c.l.b16 %v439
    %v479 = vunpack.c.l.b16 %v440
    %v480 = vpack.c.b16 %v465, %v464
    %v481 = vpack.c.b16 %v467, %v466
    %v482 = vpack.c.b16 %v469, %v468
    %v483 = vpack.c.b16 %v471, %v470
    %v484 = vpack.c.b16 %v473, %v472
    %v485 = vpack.c.b16 %v475, %v474
    %v486 = vpack.c.b16 %v477, %v476
    %v487 = vpack.c.b16 %v479, %v478
    %496 = vmatprep.subr.bf16.mxu0 0
    %497 = vmatpush1.bf16.msra.mxu0 %v480
    %498 = vmatprep.subr.bf16.mxu0 0
    %499 = vmatpush1.bf16.msra.mxu0 %v481
    %500 = vmatprep.subr.bf16.mxu0 0
    %501 = vmatpush1.bf16.msra.mxu0 %v482
    %502 = vmatprep.subr.bf16.mxu0 0
    %503 = vmatpush1.bf16.msra.mxu0 %v483
    %504 = vmatprep.subr.bf16.mxu0 0
    %505 = vmatpush1.bf16.msra.mxu0 %v484
    %506 = vmatprep.subr.bf16.mxu0 0
    %507 = vmatpush1.bf16.msra.mxu0 %v485
    %508 = vmatprep.subr.bf16.mxu0 0
    %509 = vmatpush1.bf16.msra.mxu0 %v486
    %510 = vmatprep.subr.bf16.mxu0 0
    %511 = vmatpush1.bf16.msra.mxu0 %v487
    %512 = vmatprep.subr.bf16.mxu0 0
    %513 = vmatpush1.bf16.msra.mxu0 0
    %514 = vmatprep.subr.bf16.mxu0 0
    %515 = vmatpush1.bf16.msra.mxu0 0
    %516 = vmatprep.subr.bf16.mxu0 0
    %517 = vmatpush1.bf16.msra.mxu0 0
    %518 = vmatprep.subr.bf16.mxu0 0
    %519 = vmatpush1.bf16.msra.mxu0 0
    %520 = vmatprep.subr.bf16.mxu0 0
    %521 = vmatpush1.bf16.msra.mxu0 0
    %522 = vmatprep.subr.bf16.mxu0 0
    %523 = vmatpush1.bf16.msra.mxu0 0
    %524 = vmatprep.subr.bf16.mxu0 0
    %525 = vmatpush1.bf16.msra.mxu0 0
    %526 = vmatprep.subr.bf16.mxu0 0
    %527 = vmatpush1.bf16.msra.mxu0 0
    %528 = vmatprep.mubr.bf16.mxu0 0
    %529 = vmatmul.mubr.bf16.gmra.mrb[0].mxu0 %v424
    %v530 = vpop.f32.mrb[0].mxu0
    %v531 = vadd.f32 %v446, %v530
    %v532 = vpop.f32.mrb[0].mxu0
    %v533 = vpop.f32.mrb[0].mxu0
    %v534 = vpop.f32.mrb[0].mxu0
    %535 = vdwg.mxu0
    %v536 = vmax.f32 %v531, 0.0
    %537 = vst [vmem:[#allocation7] sm:$0x3] %v536
    // Predicated region
    $region30: #{forward.1} parent=1 // pred_check
      _
    $region31: #{forward.1} parent=1 // pred_check_branch
      %539 = sbr.rel (0) target = $region33
    $region32: #{forward.1} parent=1 // pred_region
      %s541 = ssub.s32 32, 32
      %542 = vsyncadd [#allocation4], %s541
      %s544 = sshll.u32 [#allocation7], 4
      %s545 = int_to_ptr.vmem [resolvable:$true] %s544
      %547 = dma.vmem_to_hbm [thread:$0]  %s545, 32, %s5, [#allocation4]
    $region33: #{forward.1} parent=1 // pred_fallthru
      _
    // Predicated region
    $region34: #{forward.1} parent=1 // pred_check
      _
    $region35: #{forward.1} parent=1 // pred_check_branch
      %549 = sbr.rel (0) target = $region37
    $region36: #{forward.1} parent=1 // pred_region
      %550 = dma.done [#allocation4], 32
    $region37: #{forward.1} parent=1 // pred_fallthru
      _
    %551 = vsyncpa [#allocation3], 1
    %552 = vsyncpa [#allocation6], 1
    %553 = vsyncpa [#allocation4], 1

</llo_original>
